<compile_context>
chip_gen: v5e
topology: v5e:2x2
jax: 0.10.0
libtpu: 0.0.40
codegen_flags: <defaults>
</compile_context>

<pallas_src>
import functools

import jax
import jax.numpy as jnp
from jax import lax
from jax.experimental import pallas as pl
from jax.experimental.pallas import tpu as pltpu


# ----------------------------------------------------------------------------
# Pure-jnp value (for fused call sites and for the custom_vjp fwd rule).
# ----------------------------------------------------------------------------
def rosenbrock_value_jnp(arg):
    a, b = arg[0], arg[1]
    r1 = 1.0 - a
    r2 = b - a * a
    return r1 * r1 + 100.0 * r2 * r2


# ----------------------------------------------------------------------------
# Forward kernel: a handful of scalar ops on SMEM refs (identical v5e/v6e/v7x).
# No VMEM, no grid, no MXU — there is nothing to tile for 2 scalars.
# ----------------------------------------------------------------------------
def _rosenbrock_kernel(arg_ref, out_ref):
    a = arg_ref[0]
    b = arg_ref[1]
    r1 = 1.0 - a
    r2 = b - a * a
    out_ref[0] = r1 * r1 + 100.0 * r2 * r2


def _forward_pallas(arg):
    out = pl.pallas_call(
        _rosenbrock_kernel,
        out_shape=jax.ShapeDtypeStruct((1,), jnp.float32),
        in_specs=[pl.BlockSpec(memory_space=pltpu.SMEM)],
        out_specs=pl.BlockSpec(memory_space=pltpu.SMEM),
    )(arg)
    # reshape (not a slice) -> fuses away under jit; keeps 0-d semantics.
    return out.reshape(())


# ----------------------------------------------------------------------------
# custom_vjp so jax.grad works (nn.Parameter implies gradients are wanted).
# fwd rule uses plain jnp for the primal (perf review: avoids a wasted Pallas
# launch per grad call — the primal from fwd is discarded under jax.grad).
# ----------------------------------------------------------------------------
@jax.custom_vjp
def rosenbrock_forward(arg):
    """arg: float32 (2,). Returns the Rosenbrock value as a 0-d float32."""
    return _forward_pallas(arg)


def _rosenbrock_fwd(arg):
    return rosenbrock_value_jnp(arg), arg


def _rosenbrock_bwd(arg, g):
    a, b = arg[0], arg[1]
    r2 = b - a * a
    da = -2.0 * (1.0 - a) - 400.0 * a * r2
    db = 200.0 * r2
    return (g * jnp.stack([da, db]).astype(arg.dtype),)


rosenbrock_forward.defvjp(_rosenbrock_fwd, _rosenbrock_bwd)


# ----------------------------------------------------------------------------
# Amortized variant: the whole SGD loop runs inside ONE kernel launch with the
# parameter resident in SMEM scalars.  n_steps default raised to 512 so the
# loop body dominates the ~600-cycle launch overhead; fori_loop partially
# unrolled so the scalar-ALU dependence chain is schedulable.
# ----------------------------------------------------------------------------
def _rosenbrock_sgd_kernel(arg_ref, arg_out_ref, loss_ref, *, n_steps, lr):
    def body(_, ab):
        a, b = ab
        r2 = b - a * a
        da = -2.0 * (1.0 - a) - 400.0 * a * r2
        db = 200.0 * r2
        return a - lr * da, b - lr * db

    a, b = lax.fori_loop(0, n_steps, body, (arg_ref[0], arg_ref[1]), unroll=16)
    # arg_out aliases arg (input_output_aliases={0:0}); read-before-write above.
    arg_out_ref[0] = a
    arg_out_ref[1] = b
    r1 = 1.0 - a
    r2 = b - a * a
    loss_ref[0] = r1 * r1 + 100.0 * r2 * r2


def rosenbrock_sgd(arg, *, n_steps=512, lr=1e-4):
    """n_steps plain-SGD steps on the Rosenbrock objective in ONE kernel launch.

    Returns (updated_arg (2,), final_loss 0-d).  Note: at small n_steps (<~100)
    the launch overhead still dominates and a plain jitted lax.fori_loop is at
    least as fast; this form pays off for large n_steps.
    This variant intentionally mutates the parameter (unlike the module's pure
    forward).
    """
    new_arg, loss = pl.pallas_call(
        functools.partial(_rosenbrock_sgd_kernel, n_steps=n_steps, lr=lr),
        out_shape=(
            jax.ShapeDtypeStruct((2,), jnp.float32),
            jax.ShapeDtypeStruct((1,), jnp.float32),
        ),
        in_specs=[pl.BlockSpec(memory_space=pltpu.SMEM)],
        out_specs=(
            pl.BlockSpec(memory_space=pltpu.SMEM),
            pl.BlockSpec(memory_space=pltpu.SMEM),
        ),
        input_output_aliases={0: 0},  # arg aliases arg_out (in-place update, P8)
    )(arg)
    return new_arg, loss.reshape(())


# ----------------------------------------------------------------------------
# Batched, lane-dense VPU variant (perf-review structural suggestion):
# evaluate many Rosenbrock instances at once.  a, b are (R, 128) f32 slabs
# ((8,128)-aligned), output is lane-dense, grid over rows, "parallel" axis.
# Elementwise VPU work; mem-bound, so use a decent block size.
# ----------------------------------------------------------------------------
def _rosenbrock_batched_kernel(a_ref, b_ref, o_ref):
    a = a_ref[...]
    b = b_ref[...]
    r1 = 1.0 - a
    r2 = b - a * a
    o_ref[...] = r1 * r1 + 100.0 * r2 * r2


def rosenbrock_batched(a, b, *, block_rows=128):
    R, L = a.shape
    assert L == 128 and R % block_rows == 0
    return pl.pallas_call(
        _rosenbrock_batched_kernel,
        out_shape=jax.ShapeDtypeStruct((R, L), jnp.float32),
        grid_spec=pltpu.PrefetchScalarGridSpec(
            num_scalar_prefetch=0,
            grid=(R // block_rows,),
            in_specs=[
                pl.BlockSpec((block_rows, L), lambda i: (i, 0)),
                pl.BlockSpec((block_rows, L), lambda i: (i, 0)),
            ],
            out_specs=pl.BlockSpec((block_rows, L), lambda i: (i, 0)),
        ),
        compiler_params=pltpu.CompilerParams(dimension_semantics=("parallel",)),
    )(a, b)


# Pure-JAX references --------------------------------------------------------
def _rosenbrock_ref(p):
    return (1.0 - p[0]) ** 2 + 100.0 * (p[1] - p[0] ** 2) ** 2


def _sgd_ref(arg, n_steps, lr):
    def body(_, ab):
        a, b = ab
        r2 = b - a * a
        da = -2.0 * (1.0 - a) - 400.0 * a * r2
        db = 200.0 * r2
        return a - lr * da, b - lr * db

    a, b = lax.fori_loop(0, n_steps, body, (arg[0], arg[1]))
    return jnp.stack([a, b])


if __name__ == "__main__":
    # Deterministic parameter init, matching the module's default `start`.
    arg = jnp.array([-3.0, -4.0], dtype=jnp.float32)

    # forward(*input) ignores its inputs; build a small dummy anyway for parity.
    key = jax.random.PRNGKey(0)
    k_dummy, k_a, k_b = jax.random.split(key, 3)
    _dummy_input = jax.random.normal(k_dummy, (2, 4), dtype=jnp.float32)  # ignored

    # --- forward (kernel) vs reference ---
    fwd = jax.jit(rosenbrock_forward)
    result = fwd(arg)
    jax.block_until_ready(result)
    expected = _rosenbrock_ref(arg)
    assert result.shape == (), result.shape
    assert jnp.allclose(result, expected, rtol=1e-6), (result, expected)

    # --- gradient via custom_vjp vs autodiff of the reference ---
    grad = jax.jit(jax.grad(rosenbrock_forward))(arg)
    jax.block_until_ready(grad)
    expected_grad = jax.grad(_rosenbrock_ref)(arg)
    assert jnp.allclose(grad, expected_grad, rtol=1e-5, atol=1e-5), (grad, expected_grad)

    # --- batched lane-dense VPU variant vs vectorized reference ---
    a_batch = jax.random.normal(k_a, (256, 128), dtype=jnp.float32)
    b_batch = jax.random.normal(k_b, (256, 128), dtype=jnp.float32)
    batched = jax.jit(rosenbrock_batched)(a_batch, b_batch)
    jax.block_until_ready(batched)
    batched_ref = (1.0 - a_batch) ** 2 + 100.0 * (b_batch - a_batch ** 2) ** 2
    assert jnp.allclose(batched, batched_ref, rtol=1e-6, atol=1e-6)

    # --- amortized in-kernel SGD loop vs pure-JAX loop (run last: arg aliased) ---
    n_steps, lr = 512, 1e-4
    new_arg, final_loss = jax.jit(
        functools.partial(rosenbrock_sgd, n_steps=n_steps, lr=lr)
    )(arg)
    jax.block_until_ready((new_arg, final_loss))
    ref_arg = _sgd_ref(arg, n_steps, lr)
    assert jnp.allclose(new_arg, ref_arg, rtol=1e-4, atol=1e-5), (new_arg, ref_arg)
    assert jnp.allclose(final_loss, _rosenbrock_ref(new_arg), rtol=1e-5, atol=1e-6)

    print("KERNEL_OK")
</pallas_src>

<mosaic_0001>
module attributes {stable_mosaic.version = 11 : i64} {
  func.func @_rosenbrock_kernel(%arg0: memref<2xf32, #tpu.memory_space<smem>>, %arg1: memref<1xf32, #tpu.memory_space<smem>>) attributes {dimension_semantics = [], scalar_prefetch = 0 : i64, scratch_operands = 0 : i64, tpu.core_type = #tpu.core_type<tc>} {
    %c0 = arith.constant 0 : index
    %0 = memref.load %arg0[%c0] : memref<2xf32, #tpu.memory_space<smem>>
    %c1 = arith.constant 1 : index
    %1 = memref.load %arg0[%c1] : memref<2xf32, #tpu.memory_space<smem>>
    %cst = arith.constant 1.000000e+00 : f32
    %2 = arith.subf %cst, %0 : f32
    %3 = arith.mulf %0, %0 : f32
    %4 = arith.subf %1, %3 : f32
    %5 = arith.mulf %2, %2 : f32
    %cst_0 = arith.constant 1.000000e+02 : f32
    %6 = arith.mulf %cst_0, %4 : f32
    %7 = arith.mulf %6, %4 : f32
    %8 = arith.addf %5, %7 : f32
    %c0_1 = arith.constant 0 : index
    %9 = memref.load %arg1[%c0_1] : memref<1xf32, #tpu.memory_space<smem>>
    memref.store %8, %arg1[%c0_1] : memref<1xf32, #tpu.memory_space<smem>>
    return
  }
}

</mosaic_0001>

<llo_original>
// kernel: rosenbrock_forward.1
$region0: #{rosenbrock_forward.1}
  #allocation0 [shape = 'u32[]', space=smem, size = 0x4, offset = 0x4, fixed_abs, tag = 'smem constant byte address 0x4 - core index']
  #allocation1 [shape = 'u32[72,128]{1,0:T(1,128)}', space=vmem, size = 0x9000, scoped, tag = 'internal scratch']
  %s0 = inlined_call_operand.hbm [shape: f32[2], index: 0, kind: input, shape index: {}]
  %s1 = inlined_call_operand.hbm [shape: f32[1], index: 1, kind: output, shape index: {}]
  %s2 = sld [smem:[#allocation0]]
  $region18: #{rosenbrock_forward.1} parent=0
    _
  %s4 = ssub.s32 1, %s2
  %s5 = scalar_select 0, %s4, %s2
  $region1: #{rosenbrock_forward.1} parent=0
    #allocation2 [shape = 'u8[512]{0}', space=smem, size = 0x200, scoped, tag = 'input window, operand 0, single buffered']
    #allocation3 [shape = 's32[1]{0}', space=sflag, size = 0x4, scoped, tag = 'scoped memory for rosenbrock_forward.1']
    #allocation4 [shape = 's32[1]{0}', space=sflag, size = 0x4, scoped, tag = 'scoped memory for rosenbrock_forward.1']
    #allocation5 [shape = 'u8[512]{0}', space=smem, size = 0x200, scoped, tag = 'output window, operand 0, single buffered']
    %6 = vsyncpa [#allocation3], 0
    %7 = vsyncpa [#allocation4], 0
    // Predicated region
    $region2: #{rosenbrock_forward.1} parent=1 // pred_check
      _
    $region3: #{rosenbrock_forward.1} parent=1 // pred_check_branch
      %9 = sbr.rel (0) target = $region5
    $region4: #{rosenbrock_forward.1} parent=1 // pred_region
      %11 = vsyncadd [#allocation3], 0
      %s13 = sshll.u32 %s0, 4
      %s14 = int_to_ptr.hbm [resolvable:$true] %s13
      %16 = dma.hbm_to_smem %s14, 16, [#allocation2], [#allocation3]
    $region5: #{rosenbrock_forward.1} parent=1 // pred_fallthru
      _
    // Predicated region
    $region6: #{rosenbrock_forward.1} parent=1 // pred_check
      _
    $region7: #{rosenbrock_forward.1} parent=1 // pred_check_branch
      %18 = sbr.rel (0) target = $region9
    $region8: #{rosenbrock_forward.1} parent=1 // pred_region
      %20 = dma.done [#allocation3], 16
    $region9: #{rosenbrock_forward.1} parent=1 // pred_fallthru
      _
    %21 = sfence
    %s22 = sld [smem:[#allocation2]]
    %s23 = sld [smem:[#allocation2 + $0x1]]
    %s24 = ssub.f32 1.0, %s22
    %s25 = smul.f32 %s22, %s22
    %s26 = ssub.f32 %s23, %s25
    %s27 = smul.f32 %s24, %s24
    %s28 = smul.f32 %s26, 100.0
    %s29 = smul.f32 %s28, %s26
    %s30 = sadd.f32 %s27, %s29
    %s31 = scalar_lea.smem [#allocation5], 0
    %32 = sst [smem:[%s31]] %s30
    // Predicated region
    $region10: #{rosenbrock_forward.1} parent=1 // pred_check
      _
    $region11: #{rosenbrock_forward.1} parent=1 // pred_check_branch
      %34 = sbr.rel (0) target = $region13
    $region12: #{rosenbrock_forward.1} parent=1 // pred_region
      %36 = vsyncadd [#allocation4], 0
      %s38 = sshll.u32 %s1, 4
      %s39 = int_to_ptr.hbm [resolvable:$true] %s38
      %41 = dma.smem_to_hbm [#allocation5], 16, %s39, [#allocation4]
    $region13: #{rosenbrock_forward.1} parent=1 // pred_fallthru
      _
    // Predicated region
    $region14: #{rosenbrock_forward.1} parent=1 // pred_check
      _
    $region15: #{rosenbrock_forward.1} parent=1 // pred_check_branch
      %43 = sbr.rel (0) target = $region17
    $region16: #{rosenbrock_forward.1} parent=1 // pred_region
      %45 = dma.done [#allocation4], 16
    $region17: #{rosenbrock_forward.1} parent=1 // pred_fallthru
      _
    %46 = sfence
    %47 = vsyncpa [#allocation3], 1
    %48 = vsyncpa [#allocation4], 1

</llo_original>
